<compile_context>
chip_gen: v7x
topology: tpu7x:2x2x1
jax: 0.10.0
libtpu: 0.0.40
codegen_flags: <defaults>
</compile_context>

<pallas_src>
import functools

import jax
import jax.numpy as jnp
from jax.experimental import pallas as pl
from jax.experimental.pallas import tpu as pltpu


def _ce_threshold_kernel(x_ref, t_ref, out_ref, acc_ref, *,
                         threshold, n_rows, tile_n, steps):
    core = pl.program_id(0)          # leading axis (CORE_PARALLEL on v7x)
    step = pl.program_id(1)          # reduction axis over row tiles

    @pl.when(step == 0)
    def _init():
        acc_ref[0] = jnp.float32(0.0)

    x = x_ref[...].astype(jnp.float32)        # (tile_n, C) logits
    t = t_ref[...].astype(jnp.float32)        # (tile_n, C) soft targets

    # log-softmax(output) via log-sum-exp: log p_c = (x_c - x_max) - lse
    x_max = jnp.max(x, axis=-1, keepdims=True)
    xs = x - x_max
    lse = jnp.log(jnp.sum(jnp.exp(xs), axis=-1, keepdims=True))       # (tile_n, 1)

    # softmax(clamp(target, max=threshold)) kept unnormalized: t_sm = et / sum_et
    t_c = jnp.minimum(t, jnp.float32(threshold))
    t_max = jnp.max(t_c, axis=-1, keepdims=True)
    et = jnp.exp(t_c - t_max)
    sum_et = jnp.sum(et, axis=-1, keepdims=True)                      # (tile_n, 1)
    dot = jnp.sum(et * xs, axis=-1, keepdims=True)                    # (tile_n, 1)

    # Per-row divide on the EUP (approx reciprocal) + one Newton step for
    # full f32 accuracy.  sum_et >= 1 always (max element contributes exp(0)).
    inv = pl.reciprocal(sum_et, approx=True)
    inv = inv * (jnp.float32(2.0) - sum_et * inv)

    # -sum_c t_sm_c * log p_c  ==  lse - sum_c(et_c*(x_c - x_max)) / sum_et
    per_row = lse - dot * inv                                         # (tile_n, 1)

    # Logical (unclamped) row offset of this grid slot.  Slots whose rows lie
    # entirely past n_rows re-read the (clamped) last block but contribute 0.
    row_base = (core * steps + step) * tile_n

    @pl.when(row_base + tile_n <= n_rows)
    def _interior():                      # no padded / out-of-range rows here
        acc_ref[0] += jnp.sum(per_row)

    @pl.when(row_base + tile_n > n_rows)
    def _edge():                          # mask garbage rows (DMA edge padding)
        row_ids = row_base + jax.lax.broadcasted_iota(jnp.int32, (tile_n, 1), 0)
        masked = jnp.where(row_ids < n_rows, per_row, jnp.float32(0.0))
        acc_ref[0] += jnp.sum(masked)

    @pl.when(step == pl.num_programs(1) - 1)
    def _finalize():
        # Lane-dense (1, 8, 128) slab filled with this core's partial sum.
        out_ref[...] = jnp.full(out_ref.shape, acc_ref[0], jnp.float32)


def _vmem_capacity_bytes():
    try:
        info = pltpu.get_tpu_info()
        v = getattr(info, "vmem_capacity_bytes", None)
        if v:
            return int(v)
    except Exception:
        pass
    return 64 * 1024 * 1024   # conservative (v7x-sized) fallback


def _num_tensorcores():
    # v7x has 2 TensorCores per device; v5e/v6e have 1.
    try:
        info = pltpu.get_tpu_info()
        for attr in ("num_cores", "num_tensorcores", "tensorcore_count", "core_count"):
            v = getattr(info, attr, None)
            if v:
                return max(1, min(2, int(v)))
    except Exception:
        pass
    try:
        kind = jax.devices()[0].device_kind.lower()
        if "v7" in kind or "7x" in kind:
            return 2
    except Exception:
        pass
    return 1


def cross_entropy_loss_with_threshold(output, target, threshold=0.5):
    """Pallas wrapper. output/target: (N, C) float arrays. Returns scalar f32."""
    assert output.shape == target.shape and output.ndim == 2
    n, c = output.shape

    itemsize = max(output.dtype.itemsize, target.dtype.itemsize)
    sub = {4: 8, 2: 16, 1: 32}.get(itemsize, 8)        # min sublane tile for dtype

    # Per-generation sizing: v7x has only 64 MiB VMEM per TC -> smaller blocks
    # and a tighter scoped-VMEM cap; v5e/v6e (128 MiB) take ~8 MiB blocks.
    vmem_cap = _vmem_capacity_bytes()
    if vmem_cap <= 80 * 1024 * 1024:                   # v7x-class
        target_block_bytes = 3 * 1024 * 1024
        vmem_limit = 40 * 1024 * 1024
    else:                                              # v5e / v6e
        target_block_bytes = 8 * 1024 * 1024
        vmem_limit = 80 * 1024 * 1024

    bytes_per_row = max(c * itemsize, 1)
    tile_n = max(sub, (target_block_bytes // bytes_per_row) // sub * sub)
    n_up = -(-n // sub) * sub                          # N rounded up to sublane tile
    tile_n = min(tile_n, n_up)

    total_blocks = -(-n // tile_n)                     # real row blocks (no padding)
    num_cores = max(1, min(_num_tensorcores(), total_blocks))
    steps = -(-total_blocks // num_cores)
    last_block = total_blocks - 1

    # Clamp logical block index so no block slot starts past the array end;
    # fully out-of-range slots re-read the last block and are masked to 0.
    def row_map(p, i):
        return (jnp.minimum(p * steps + i, last_block), 0)

    kernel = functools.partial(_ce_threshold_kernel, threshold=threshold,
                               n_rows=n, tile_n=tile_n, steps=steps)

    cost = pl.CostEstimate(
        flops=10 * n * c,
        transcendentals=2 * n * c + 3 * n,   # 2 exps/elem + log & recip per row
        bytes_accessed=n * c * (output.dtype.itemsize + target.dtype.itemsize)
        + num_cores * 8 * 128 * 4,
    )

    def _run(dim_sems):
        return pl.pallas_call(
            kernel,
            out_shape=jax.ShapeDtypeStruct((num_cores, 8, 128), jnp.float32),
            grid_spec=pltpu.PrefetchScalarGridSpec(
                num_scalar_prefetch=0,
                grid=(num_cores, steps),
                in_specs=[
                    pl.BlockSpec((tile_n, c), row_map),
                    pl.BlockSpec((tile_n, c), row_map),
                ],
                out_specs=pl.BlockSpec((1, 8, 128), lambda p, i: (p, 0, 0)),
                scratch_shapes=[pltpu.SMEM((1,), jnp.float32)],
            ),
            compiler_params=pltpu.CompilerParams(
                dimension_semantics=dim_sems,
                vmem_limit_bytes=vmem_limit,
            ),
            cost_estimate=cost,
        )(output, target)

    if num_cores > 1:
        # CORE_PARALLEL actually shards the leading axis across v7x's two TCs;
        # fall back to plain "parallel" if the enum path is rejected.
        candidates = [(pltpu.CORE_PARALLEL, pltpu.ARBITRARY),
                      ("parallel", "arbitrary")]
    else:
        candidates = [("arbitrary", "arbitrary")]

    partials = None
    for idx, sems in enumerate(candidates):
        try:
            partials = _run(sems)
            break
        except Exception:
            if idx == len(candidates) - 1:
                raise

    # Tiny epilogue in JAX: combine per-core partial sums, divide by true N.
    return jnp.sum(partials[:, 0, 0]) / jnp.float32(n)


def _reference(output, target, threshold=0.5):
    p = jax.nn.softmax(output, axis=-1)
    t = jax.nn.softmax(jnp.minimum(target, threshold), axis=-1)
    return jnp.mean(-jnp.sum(t * jnp.log(p), axis=1))


if __name__ == "__main__":
    key = jax.random.PRNGKey(0)
    k1, k2 = jax.random.split(key)

    # Small, module-consistent shapes: 16 rows, 128 classes (lane-aligned).
    N, C = 16, 128
    output = jax.random.normal(k1, (N, C), dtype=jnp.float32)
    target = jax.random.normal(k2, (N, C), dtype=jnp.float32)

    loss = jax.block_until_ready(
        cross_entropy_loss_with_threshold(output, target, threshold=0.5))
    ref = _reference(output, target, threshold=0.5)
    assert jnp.allclose(loss, ref, rtol=1e-4, atol=1e-4), (loss, ref)

    # Ragged batch (not a sublane multiple): exercises the no-pad edge-block
    # masking path instead of a jnp.pad HBM round-trip.
    N2 = 13
    out2 = jax.random.normal(k1, (N2, C), dtype=jnp.float32)
    tgt2 = jax.random.normal(k2, (N2, C), dtype=jnp.float32)
    loss2 = jax.block_until_ready(
        cross_entropy_loss_with_threshold(out2, tgt2, threshold=0.5))
    ref2 = _reference(out2, tgt2, threshold=0.5)
    assert jnp.allclose(loss2, ref2, rtol=1e-4, atol=1e-4), (loss2, ref2)

    print("KERNEL_OK")
</pallas_src>

<mosaic_0001>
module attributes {stable_mosaic.version = 11 : i64} {
  func.func @_ce_threshold_kernel(%arg0: i32, %arg1: i32, %arg2: memref<16x128xf32, #tpu.memory_space<vmem>>, %arg3: memref<16x128xf32, #tpu.memory_space<vmem>>, %arg4: memref<1x8x128xf32, #tpu.memory_space<vmem>>, %arg5: memref<1xf32, #tpu.memory_space<smem>>) attributes {dimension_semantics = [#tpu.dimension_semantics<arbitrary>, #tpu.dimension_semantics<arbitrary>], iteration_bounds = array<i64: 1, 1>, scalar_prefetch = 0 : i64, scratch_operands = 1 : i64, tpu.core_type = #tpu.core_type<tc>, window_params = [{transform_indices = @transform_0, window_bounds = array<i64: 16, 128>}, {transform_indices = @transform_1, window_bounds = array<i64: 16, 128>}, {transform_indices = @transform_2, window_bounds = array<i64: 1, 8, 128>}]} {
    %c0_i32 = arith.constant 0 : i32
    %0 = arith.cmpi eq, %arg1, %c0_i32 : i32
    %1 = arith.extui %0 : i1 to i32
    %c0_i32_0 = arith.constant 0 : i32
    %2 = arith.cmpi ne, %1, %c0_i32_0 : i32
    scf.if %2 {
      %cst_18 = arith.constant 0.000000e+00 : f32
      %c0_19 = arith.constant 0 : index
      %46 = memref.load %arg5[%c0_19] : memref<1xf32, #tpu.memory_space<smem>>
      memref.store %cst_18, %arg5[%c0_19] : memref<1xf32, #tpu.memory_space<smem>>
    } else {
    }
    %c0 = arith.constant 0 : index
    %c0_1 = arith.constant 0 : index
    %3 = vector.load %arg2[%c0, %c0_1] : memref<16x128xf32, #tpu.memory_space<vmem>>, vector<16x128xf32>
    %c0_2 = arith.constant 0 : index
    %c0_3 = arith.constant 0 : index
    %4 = vector.load %arg3[%c0_2, %c0_3] : memref<16x128xf32, #tpu.memory_space<vmem>>, vector<16x128xf32>
    %cst = arith.constant dense<0xFF800000> : vector<16xf32>
    %5 = vector.multi_reduction <maximumf>, %3, %cst [1] : vector<16x128xf32> to vector<16xf32>
    %6 = vector.shape_cast %5 : vector<16xf32> to vector<16x1xf32>
    %7 = vector.broadcast %6 : vector<16x1xf32> to vector<16x128xf32>
    %8 = arith.subf %3, %7 : vector<16x128xf32>
    %9 = math.exp %8 : vector<16x128xf32>
    %cst_4 = arith.constant dense<0.000000e+00> : vector<16xf32>
    %10 = vector.multi_reduction <add>, %9, %cst_4 [1] : vector<16x128xf32> to vector<16xf32>
    %11 = vector.shape_cast %10 : vector<16xf32> to vector<16x1xf32>
    %12 = math.log %11 : vector<16x1xf32>
    %cst_5 = arith.constant 5.000000e-01 : f32
    %13 = vector.broadcast %cst_5 : f32 to vector<16x128xf32>
    %14 = arith.minimumf %4, %13 : vector<16x128xf32>
    %cst_6 = arith.constant dense<0xFF800000> : vector<16xf32>
    %15 = vector.multi_reduction <maximumf>, %14, %cst_6 [1] : vector<16x128xf32> to vector<16xf32>
    %16 = vector.shape_cast %15 : vector<16xf32> to vector<16x1xf32>
    %17 = vector.broadcast %16 : vector<16x1xf32> to vector<16x128xf32>
    %18 = arith.subf %14, %17 : vector<16x128xf32>
    %19 = math.exp %18 : vector<16x128xf32>
    %cst_7 = arith.constant dense<0.000000e+00> : vector<16xf32>
    %20 = vector.multi_reduction <add>, %19, %cst_7 [1] : vector<16x128xf32> to vector<16xf32>
    %21 = vector.shape_cast %20 : vector<16xf32> to vector<16x1xf32>
    %22 = arith.mulf %19, %8 : vector<16x128xf32>
    %cst_8 = arith.constant dense<0.000000e+00> : vector<16xf32>
    %23 = vector.multi_reduction <add>, %22, %cst_8 [1] : vector<16x128xf32> to vector<16xf32>
    %24 = vector.shape_cast %23 : vector<16xf32> to vector<16x1xf32>
    %25 = tpu.reciprocal %21 {approx = true} : vector<16x1xf32> -> vector<16x1xf32>
    %26 = arith.mulf %21, %25 : vector<16x1xf32>
    %cst_9 = arith.constant 2.000000e+00 : f32
    %27 = vector.broadcast %cst_9 : f32 to vector<16x1xf32>
    %28 = arith.subf %27, %26 : vector<16x1xf32>
    %29 = arith.mulf %25, %28 : vector<16x1xf32>
    %30 = arith.mulf %24, %29 : vector<16x1xf32>
    %31 = arith.subf %12, %30 : vector<16x1xf32>
    %c1_i32 = arith.constant 1 : i32
    %32 = arith.muli %arg0, %c1_i32 : i32
    %33 = arith.addi %32, %arg1 : i32
    %c16_i32 = arith.constant 16 : i32
    %34 = arith.muli %33, %c16_i32 : i32
    %c16_i32_10 = arith.constant 16 : i32
    %35 = arith.addi %34, %c16_i32_10 : i32
    %c16_i32_11 = arith.constant 16 : i32
    %36 = arith.cmpi sle, %35, %c16_i32_11 : i32
    %37 = arith.extui %36 : i1 to i32
    %c0_i32_12 = arith.constant 0 : i32
    %38 = arith.cmpi ne, %37, %c0_i32_12 : i32
    scf.if %38 {
      %c0_18 = arith.constant 0 : index
      %46 = memref.load %arg5[%c0_18] : memref<1xf32, #tpu.memory_space<smem>>
      %47 = vector.shape_cast %31 : vector<16x1xf32> to vector<1x16x1xf32>
      %cst_19 = arith.constant dense<0.000000e+00> : vector<1xf32>
      %48 = vector.multi_reduction <add>, %47, %cst_19 [1, 2] : vector<1x16x1xf32> to vector<1xf32>
      %49 = vector.shape_cast %48 : vector<1xf32> to vector<1x1x1xf32>
      %50 = vector.extract %49[0, 0, 0] : f32 from vector<1x1x1xf32>
      %51 = arith.addf %46, %50 : f32
      %c0_20 = arith.constant 0 : index
      %52 = memref.load %arg5[%c0_20] : memref<1xf32, #tpu.memory_space<smem>>
      memref.store %51, %arg5[%c0_20] : memref<1xf32, #tpu.memory_space<smem>>
    } else {
    }
    %c16_i32_13 = arith.constant 16 : i32
    %39 = arith.addi %34, %c16_i32_13 : i32
    %c16_i32_14 = arith.constant 16 : i32
    %40 = arith.cmpi sgt, %39, %c16_i32_14 : i32
    %41 = arith.extui %40 : i1 to i32
    %c0_i32_15 = arith.constant 0 : i32
    %42 = arith.cmpi ne, %41, %c0_i32_15 : i32
    scf.if %42 {
      %46 = tpu.iota {dimensions = array<i32: 0>} : vector<16x1xi32>
      %47 = vector.broadcast %34 : i32 to vector<16x1xi32>
      %48 = arith.addi %47, %46 : vector<16x1xi32>
      %c16_i32_18 = arith.constant 16 : i32
      %49 = vector.broadcast %c16_i32_18 : i32 to vector<16x1xi32>
      %50 = arith.cmpi slt, %48, %49 : vector<16x1xi32>
      %cst_19 = arith.constant 0.000000e+00 : f32
      %51 = vector.broadcast %cst_19 : f32 to vector<16x1xf32>
      %52 = arith.select %50, %31, %51 : vector<16x1xi1>, vector<16x1xf32>
      %c0_20 = arith.constant 0 : index
      %53 = memref.load %arg5[%c0_20] : memref<1xf32, #tpu.memory_space<smem>>
      %54 = vector.shape_cast %52 : vector<16x1xf32> to vector<1x16x1xf32>
      %cst_21 = arith.constant dense<0.000000e+00> : vector<1xf32>
      %55 = vector.multi_reduction <add>, %54, %cst_21 [1, 2] : vector<1x16x1xf32> to vector<1xf32>
      %56 = vector.shape_cast %55 : vector<1xf32> to vector<1x1x1xf32>
      %57 = vector.extract %56[0, 0, 0] : f32 from vector<1x1x1xf32>
      %58 = arith.addf %53, %57 : f32
      %c0_22 = arith.constant 0 : index
      %59 = memref.load %arg5[%c0_22] : memref<1xf32, #tpu.memory_space<smem>>
      memref.store %58, %arg5[%c0_22] : memref<1xf32, #tpu.memory_space<smem>>
    } else {
    }
    %c0_i32_16 = arith.constant 0 : i32
    %43 = arith.cmpi eq, %arg1, %c0_i32_16 : i32
    %44 = arith.extui %43 : i1 to i32
    %c0_i32_17 = arith.constant 0 : i32
    %45 = arith.cmpi ne, %44, %c0_i32_17 : i32
    scf.if %45 {
      %c0_18 = arith.constant 0 : index
      %46 = memref.load %arg5[%c0_18] : memref<1xf32, #tpu.memory_space<smem>>
      %47 = vector.broadcast %46 : f32 to vector<1x8x128xf32>
      %c0_19 = arith.constant 0 : index
      %c0_20 = arith.constant 0 : index
      %c0_21 = arith.constant 0 : index
      %48 = vector.load %arg4[%c0_19, %c0_20, %c0_21] : memref<1x8x128xf32, #tpu.memory_space<vmem>>, vector<1x8x128xf32>
      tpu.vector_store %arg4[%c0_19, %c0_20, %c0_21], %47 {strides = array<i32>} : memref<1x8x128xf32, #tpu.memory_space<vmem>>, vector<1x8x128xf32>,
    } else {
    }
    return
  }
  func.func @transform_0(%arg0: i32, %arg1: i32) -> (i32, i32) {
    %c1_i32 = arith.constant 1 : i32
    %0 = arith.muli %arg0, %c1_i32 : i32
    %1 = arith.addi %0, %arg1 : i32
    %c0_i32 = arith.constant 0 : i32
    %2 = arith.minsi %1, %c0_i32 : i32
    %c0_i32_0 = arith.constant 0 : i32
    %c0_i32_1 = arith.constant 0 : i32
    return %2, %c0_i32_0 : i32, i32
  }
  func.func @transform_1(%arg0: i32, %arg1: i32) -> (i32, i32) {
    %c1_i32 = arith.constant 1 : i32
    %0 = arith.muli %arg0, %c1_i32 : i32
    %1 = arith.addi %0, %arg1 : i32
    %c0_i32 = arith.constant 0 : i32
    %2 = arith.minsi %1, %c0_i32 : i32
    %c0_i32_0 = arith.constant 0 : i32
    %c0_i32_1 = arith.constant 0 : i32
    return %2, %c0_i32_0 : i32, i32
  }
  func.func @transform_2(%arg0: i32, %arg1: i32) -> (i32, i32, i32) {
    %c0_i32 = arith.constant 0 : i32
    %c0_i32_0 = arith.constant 0 : i32
    %c0_i32_1 = arith.constant 0 : i32
    return %arg0, %c0_i32, %c0_i32_0 : i32, i32, i32
  }
}

</mosaic_0001>

<llo_original>
// kernel: tpu_custom_call.1
$region0: #{tpu_custom_call.1}
  #allocation0 [shape = 'u32[]', space=smem, size = 0x4, offset = 0x4, fixed_abs, tag = 'smem constant byte address 0x4 - core index']
  #allocation1 [shape = 'u32[144,128]{1,0:T(1,128)}', space=vmem, size = 0x12000, scoped, tag = 'internal scratch']
  #allocation2 [shape = 'f32[1]{0:T(128)}', space=smem, size = 0x200, scoped, tag = 'scratch operand']
  %s0 = inlined_call_operand.hbm [shape: f32[16,128], index: 0, kind: input, shape index: {}]
  %s1 = inlined_call_operand.hbm [shape: f32[16,128], index: 1, kind: input, shape index: {}]
  %s2 = inlined_call_operand.hbm [shape: f32[1,8,128], index: 2, kind: output, shape index: {}]
  %s3 = sld [smem:[#allocation0]]
  $region42: #{tpu_custom_call.1} parent=0
    _
  %s5 = ssub.s32 1, %s3
  %s6 = scalar_select 0, %s5, %s3
  $region1: #{tpu_custom_call.1} parent=0
    #allocation3 [shape = 'u8[8192]{0}', space=vmem, size = 0x2000, scoped, tag = 'input window, operand 0, single buffered']
    #allocation4 [shape = 's32[1]{0}', space=sflag, size = 0x4, scoped, tag = 'scoped memory for tpu_custom_call.1']
    #allocation5 [shape = 's32[1]{0}', space=sflag, size = 0x4, scoped, tag = 'scoped memory for tpu_custom_call.1']
    #allocation6 [shape = 'u8[8192]{0}', space=vmem, size = 0x2000, scoped, tag = 'input window, operand 1, single buffered']
    #allocation7 [shape = 's32[1]{0}', space=sflag, size = 0x4, scoped, tag = 'scoped memory for tpu_custom_call.1']
    #allocation8 [shape = 'u8[4096]{0}', space=vmem, size = 0x1000, scoped, tag = 'output window, operand 0, single buffered']
    %7 = vsyncpa [#allocation4], 0
    %8 = vsyncpa [#allocation7], 0
    %9 = vsyncpa [#allocation5], 0
    // Predicated region
    $region2: #{tpu_custom_call.1} parent=1 // pred_check
      _
    $region3: #{tpu_custom_call.1} parent=1 // pred_check_branch
      %11 = sbr.rel (0) target = $region5
    $region4: #{tpu_custom_call.1} parent=1 // pred_region
      %s12 = sadd.s32 0, 0
      %p13 = scmp.lt.s32.totalorder %s12, 0
      %s14 = scalar_select %p13, %s12, 0
      %s15 = smul.u32 2, %s14
      %s17 = ssub.s32 256, 256
      %18 = vsyncadd [#allocation4], %s17
      %s19 = smul.addr %s15, 128
      %s20 = scalar_lea.hbm %s0, %s19
      %s21 = sshll.u32 [#allocation3], 4
      %s22 = int_to_ptr.vmem [resolvable:$true] %s21
      %27 = dma.hbm_to_vmem [thread:$0]  %s20, 256, %s22, [#allocation4], 128, 128, 8
    $region5: #{tpu_custom_call.1} parent=1 // pred_fallthru
      _
    // Predicated region
    $region6: #{tpu_custom_call.1} parent=1 // pred_check
      _
    $region7: #{tpu_custom_call.1} parent=1 // pred_check_branch
      %29 = sbr.rel (0) target = $region9
    $region8: #{tpu_custom_call.1} parent=1 // pred_region
      %s30 = sadd.s32 0, 0
      %p31 = scmp.lt.s32.totalorder %s30, 0
      %s32 = scalar_select %p31, %s30, 0
      %s33 = smul.u32 2, %s32
      %s35 = ssub.s32 256, 256
      %36 = vsyncadd [#allocation7], %s35
      %s37 = smul.addr %s33, 128
      %s38 = scalar_lea.hbm %s1, %s37
      %s39 = sshll.u32 [#allocation6], 4
      %s40 = int_to_ptr.vmem [resolvable:$true] %s39
      %45 = dma.hbm_to_vmem [thread:$0]  %s38, 256, %s40, [#allocation7], 128, 128, 8
    $region9: #{tpu_custom_call.1} parent=1 // pred_fallthru
      _
    // Predicated region
    $region10: #{tpu_custom_call.1} parent=1 // pred_check
      _
    $region11: #{tpu_custom_call.1} parent=1 // pred_check_branch
      %47 = sbr.rel (0) target = $region13
    $region12: #{tpu_custom_call.1} parent=1 // pred_region
      %48 = dma.done [#allocation4], 256
    $region13: #{tpu_custom_call.1} parent=1 // pred_fallthru
      _
    // Predicated region
    $region14: #{tpu_custom_call.1} parent=1 // pred_check
      _
    $region15: #{tpu_custom_call.1} parent=1 // pred_check_branch
      %50 = sbr.rel (0) target = $region17
    $region16: #{tpu_custom_call.1} parent=1 // pred_region
      %51 = dma.done [#allocation7], 256
    $region17: #{tpu_custom_call.1} parent=1 // pred_fallthru
      _
    %s52 = sadd.s32 0, 0
    %p53 = scmp.lt.s32.totalorder %s52, 0
    %s54 = scalar_select %p53, %s52, 0
    %s55 = smul.u32 2, %s54
    %s56 = sadd.s32 0, 0
    %p57 = scmp.lt.s32.totalorder %s56, 0
    %s58 = scalar_select %p57, %s56, 0
    %s59 = smul.u32 2, %s58
    %p60 = scmp.eq.s32.totalorder 0, 0
    // Predicated region
    $region18: #{tpu_custom_call.1} parent=1 // pred_check
      %p61 = pneg %p60
    $region19: #{tpu_custom_call.1} parent=1 // pred_check_branch
      %63 = sbr.rel (%p61) target = $region21
    $region20: #{tpu_custom_call.1} parent=1 // pred_region
      %s64 = scalar_lea.smem [#allocation2], 0
      %65 = sst [smem:[%s64]] 0.0
    $region21: #{tpu_custom_call.1} parent=1 // pred_fallthru
      _
    %v66 = vld [vmem:[#allocation3] sm:$0xff]
    %v67 = vld [vmem:[#allocation3 + $0x8] sm:$0xff]
    %v68 = vld [vmem:[#allocation6] sm:$0xff]
    %v69 = vld [vmem:[#allocation6 + $0x8] sm:$0xff]
    %70 = vmax.xlane.f32.xlu0 %v66
    %v71 = vpop.xlane.xlu0 %70
    %72 = vmax.xlane.f32.xlu0 %v67
    %v73 = vpop.xlane.xlu0 %72
    %v74 = vsub.f32 %v66, %v71
    %v75 = vsub.f32 %v67, %v73
    %v76 = vmul.f32 %v74, 1.442695
    %v77 = vpow.pop %v76
    %v78 = vmul.f32 %v75, 1.442695
    %v79 = vpow.pop %v78
    %80 = vadd.xlane.f32.xlu0 %v77
    %v81 = vpop.xlane.xlu0 %80
    %82 = vadd.xlane.f32.xlu0 %v79
    %v83 = vpop.xlane.xlu0 %82
    %v84 = vlog2.pop %v81
    %v85 = vmul.f32 %v84, 0.6931472
    %v86 = vlog2.pop %v83
    %v87 = vmul.f32 %v86, 0.6931472
    %v88 = vmin.f32 %v68, 0.5
    %v89 = vmin.f32 %v69, 0.5
    %90 = vmax.xlane.f32.xlu0 %v88
    %v91 = vpop.xlane.xlu0 %90
    %92 = vmax.xlane.f32.xlu0 %v89
    %v93 = vpop.xlane.xlu0 %92
    %v94 = vsub.f32 %v88, %v91
    %v95 = vsub.f32 %v89, %v93
    %v96 = vmul.f32 %v94, 1.442695
    %v97 = vpow.pop %v96
    %v98 = vmul.f32 %v95, 1.442695
    %v99 = vpow.pop %v98
    %100 = vadd.xlane.f32.xlu0 %v97
    %v101 = vpop.xlane.xlu0 %100
    %102 = vadd.xlane.f32.xlu0 %v99
    %v103 = vpop.xlane.xlu0 %102
    %v104 = vmul.f32 %v97, %v74
    %v105 = vmul.f32 %v99, %v75
    %106 = vadd.xlane.f32.xlu0 %v104
    %v107 = vpop.xlane.xlu0 %106
    %108 = vadd.xlane.f32.xlu0 %v105
    %v109 = vpop.xlane.xlu0 %108
    %v110 = vrcp.pop %v101
    %v111 = vrcp.pop %v103
    %v112 = vmul.f32 %v101, %v110
    %v113 = vmul.f32 %v103, %v111
    %v114 = vsub.f32 2.0, %v112
    %v115 = vsub.f32 2.0, %v113
    %v116 = vmul.f32 %v110, %v114
    %v117 = vmul.f32 %v111, %v115
    %v118 = vmul.f32 %v107, %v116
    %v119 = vmul.f32 %v109, %v117
    %v120 = vsub.f32 %v85, %v118
    %v121 = vsub.f32 %v87, %v119
    %s122 = sadd.s32 0, 0
    %s123 = smul.u32 %s122, 16
    %s124 = sadd.s32 %s123, 16
    %p125 = scmp.le.s32.totalorder %s124, 16
    // Predicated region
    $region22: #{tpu_custom_call.1} parent=1 // pred_check
      %p126 = pneg %p125
    $region23: #{tpu_custom_call.1} parent=1 // pred_check_branch
      %128 = sbr.rel (%p126) target = $region25
    $region24: #{tpu_custom_call.1} parent=1 // pred_region
      %s129 = sld [smem:[#allocation2]]
      %vm130 = vcmask 7168
      %v131 = vsel %vm130, %v120, 0.0
      %v132 = vsel %vm130, %v121, 0.0
      %v133 = vadd.f32 %v131, %v132
      %134 = vadd.xlane.f32.xlu0 %v133
      %v135 = vpop.xlane.xlu0 %134
      %v136 = vrot.slane %v135, 4
      %v137 = vadd.f32 %v135, %v136
      %v138 = vrot.slane %v137, 2
      %v139 = vadd.f32 %v137, %v138
      %v140 = vrot.slane %v139, 1
      %v141 = vadd.f32 %v139, %v140
      %s142 = vtos %v141
      %s143 = sadd.f32 %s129, %s142
      %s144 = scalar_lea.smem [#allocation2], 0
      %145 = sst [smem:[%s144]] %s143
    $region25: #{tpu_custom_call.1} parent=1 // pred_fallthru
      _
    %p146 = scmp.gt.s32.totalorder %s124, 16
    // Predicated region
    $region26: #{tpu_custom_call.1} parent=1 // pred_check
      %p147 = pneg %p146
    $region27: #{tpu_custom_call.1} parent=1 // pred_check_branch
      %149 = sbr.rel (%p147) target = $region29
    $region28: #{tpu_custom_call.1} parent=1 // pred_region
      %v150 = vlaneseq
      %v151 = vshrl.u32 %v150, 7
      %v152 = vadd.s32 %v151, 8
      %v153 = vstv %s123
      %v154 = vadd.s32 %v153, %v151
      %v155 = vadd.s32 %v153, %v152
      %vm156 = vcmp.lt.s32.totalorder %v154, 16
      %vm157 = vcmp.lt.s32.totalorder %v155, 16
      %v158 = vsel %vm156, %v120, 0.0
      %v159 = vsel %vm157, %v121, 0.0
      %s160 = sld [smem:[#allocation2]]
      %vm161 = vcmask 7168
      %v162 = vsel %vm161, %v158, 0.0
      %v163 = vsel %vm161, %v159, 0.0
      %v164 = vadd.f32 %v162, %v163
      %165 = vadd.xlane.f32.xlu0 %v164
      %v166 = vpop.xlane.xlu0 %165
      %v167 = vrot.slane %v166, 4
      %v168 = vadd.f32 %v166, %v167
      %v169 = vrot.slane %v168, 2
      %v170 = vadd.f32 %v168, %v169
      %v171 = vrot.slane %v170, 1
      %v172 = vadd.f32 %v170, %v171
      %s173 = vtos %v172
      %s174 = sadd.f32 %s160, %s173
      %s175 = scalar_lea.smem [#allocation2], 0
      %176 = sst [smem:[%s175]] %s174
    $region29: #{tpu_custom_call.1} parent=1 // pred_fallthru
      _
    // Predicated region
    $region30: #{tpu_custom_call.1} parent=1 // pred_check
      %p177 = pneg %p60
    $region31: #{tpu_custom_call.1} parent=1 // pred_check_branch
      %179 = sbr.rel (%p177) target = $region33
    $region32: #{tpu_custom_call.1} parent=1 // pred_region
      %s180 = sld [smem:[#allocation2]]
      %v181 = vstv %s180
      %182 = vst [vmem:[#allocation8] sm:$0xff] %v181
    $region33: #{tpu_custom_call.1} parent=1 // pred_fallthru
      _
    // Predicated region
    $region34: #{tpu_custom_call.1} parent=1 // pred_check
      _
    $region35: #{tpu_custom_call.1} parent=1 // pred_check_branch
      %184 = sbr.rel (0) target = $region37
    $region36: #{tpu_custom_call.1} parent=1 // pred_region
      %s186 = ssub.s32 128, 128
      %187 = vsyncadd [#allocation5], %s186
      %s189 = sshll.u32 [#allocation8], 4
      %s190 = int_to_ptr.vmem [resolvable:$true] %s189
      %192 = dma.vmem_to_hbm [thread:$0]  %s190, 128, %s2, [#allocation5]
    $region37: #{tpu_custom_call.1} parent=1 // pred_fallthru
      _
    // Predicated region
    $region38: #{tpu_custom_call.1} parent=1 // pred_check
      _
    $region39: #{tpu_custom_call.1} parent=1 // pred_check_branch
      %194 = sbr.rel (0) target = $region41
    $region40: #{tpu_custom_call.1} parent=1 // pred_region
      %195 = dma.done [#allocation5], 128
    $region41: #{tpu_custom_call.1} parent=1 // pred_fallthru
      _
    %196 = vsyncpa [#allocation4], 1
    %197 = vsyncpa [#allocation7], 1
    %198 = vsyncpa [#allocation5], 1

</llo_original>
